<compile_context>
chip_gen: v6e
topology: v6e:2x2x1
jax: 0.10.0
libtpu: 0.0.40
codegen_flags: <defaults>
</compile_context>

<pallas_src>
import math
from functools import partial

import jax
import jax.numpy as jnp
from jax.experimental import pallas as pl
from jax.experimental.pallas import tpu as pltpu


# ----------------------------- tile helpers --------------------------------

def _pick_tile(n, pref, mult):
    """Largest tile t <= pref with n % t == 0 and t % mult == 0 (else full n)."""
    if n <= pref:
        return n
    t = (pref // mult) * mult
    while t >= mult:
        if n % t == 0:
            return t
        t -= mult
    return n


# ------------------ fused RMSNorm + matmul (QKV projection) -----------------

def _norm_matmul_kernel(x_ref, g_ref, w_ref, o_ref, *, eps):
    x = x_ref[...]                                        # (tm, D) f32
    ms = jnp.mean(x * x, axis=-1, keepdims=True)
    xn = ((x * jax.lax.rsqrt(ms + eps)) * g_ref[...]).astype(jnp.bfloat16)
    o_ref[...] = jnp.dot(xn, w_ref[...], preferred_element_type=jnp.float32)


def norm_matmul(x, g, w, eps, *, tm_pref=256, tn_pref=256):
    """RMSNorm(x) @ w.  x: (M, D) f32, g: (D,) f32, w: (D, N) bf16 -> (M, N) f32.

    D stays whole per block (the norm needs the full row); M and N are tiled
    and both grid axes are 'parallel' so independent tiles shard across TCs.
    """
    M, D = x.shape
    _, N = w.shape
    tm = _pick_tile(M, tm_pref, 8)
    tn = _pick_tile(N, tn_pref, 128)
    return pl.pallas_call(
        partial(_norm_matmul_kernel, eps=eps),
        out_shape=jax.ShapeDtypeStruct((M, N), jnp.float32),
        grid=(M // tm, N // tn),
        in_specs=[pl.BlockSpec((tm, D), lambda i, j: (i, 0)),
                  pl.BlockSpec((1, D), lambda i, j: (0, 0)),
                  pl.BlockSpec((D, tn), lambda i, j: (0, j))],
        out_specs=pl.BlockSpec((tm, tn), lambda i, j: (i, j)),
        compiler_params=pltpu.CompilerParams(
            dimension_semantics=("parallel", "parallel")),
    )(x, g.reshape(1, D), w)


# ------------------------- tiled bf16 matmul (wo) ---------------------------

def _matmul_kernel(x_ref, w_ref, o_ref, acc_ref):
    @pl.when(pl.program_id(2) == 0)
    def _():
        acc_ref[...] = jnp.zeros_like(acc_ref)

    acc_ref[...] += jnp.dot(x_ref[...], w_ref[...],
                            preferred_element_type=jnp.float32)

    @pl.when(pl.program_id(2) == pl.num_programs(2) - 1)
    def _():
        o_ref[...] = acc_ref[...]


def matmul(x, w, *, tm_pref=256, tn_pref=256, tk_pref=512):
    """x @ w.  x: (M, K) bf16, w: (K, N) bf16 -> (M, N) f32 (VMEM accumulator)."""
    M, K = x.shape
    K2, N = w.shape
    assert K == K2
    tm = _pick_tile(M, tm_pref, 8)
    tn = _pick_tile(N, tn_pref, 128)
    tk = _pick_tile(K, tk_pref, 128)
    return pl.pallas_call(
        _matmul_kernel,
        out_shape=jax.ShapeDtypeStruct((M, N), jnp.float32),
        grid=(M // tm, N // tn, K // tk),
        in_specs=[pl.BlockSpec((tm, tk), lambda i, j, k: (i, k)),
                  pl.BlockSpec((tk, tn), lambda i, j, k: (k, j))],
        out_specs=pl.BlockSpec((tm, tn), lambda i, j, k: (i, j)),
        scratch_shapes=[pltpu.VMEM((tm, tn), jnp.float32)],
        compiler_params=pltpu.CompilerParams(
            dimension_semantics=("parallel", "parallel", "arbitrary")),
    )(x, w)


# ---------------- fused RMSNorm + SwiGLU FFN (hidden-tiled) -----------------

def _ffn_kernel(x_ref, g_ref, w1_ref, w3_ref, w2_ref, o_ref, acc_ref, *, eps):
    @pl.when(pl.program_id(1) == 0)
    def _():
        acc_ref[...] = jnp.zeros_like(acc_ref)

    x = x_ref[...]                                        # (tm, D) f32
    ms = jnp.mean(x * x, axis=-1, keepdims=True)
    xn = ((x * jax.lax.rsqrt(ms + eps)) * g_ref[...]).astype(jnp.bfloat16)
    h1 = jnp.dot(xn, w1_ref[...], preferred_element_type=jnp.float32)
    h3 = jnp.dot(xn, w3_ref[...], preferred_element_type=jnp.float32)
    hh = (h1 * jax.nn.sigmoid(h1)) * h3                   # SwiGLU slice, f32
    acc_ref[...] += jnp.dot(hh.astype(jnp.bfloat16), w2_ref[...],
                            preferred_element_type=jnp.float32)

    @pl.when(pl.program_id(1) == pl.num_programs(1) - 1)
    def _():
        o_ref[...] = acc_ref[...]


def feed_forward(x, g, w1, w3, w2, eps, *, tm_pref=256, th_pref=256):
    """w2(silu(w1 RMSNorm(x)) * w3 RMSNorm(x)).  Hidden dim streamed in tiles;
    only a (tm, th) slice of the SwiGLU intermediate ever lives in VMEM."""
    M, D = x.shape
    _, Hdn = w1.shape
    tm = _pick_tile(M, tm_pref, 8)
    th = _pick_tile(Hdn, th_pref, 128)
    return pl.pallas_call(
        partial(_ffn_kernel, eps=eps),
        out_shape=jax.ShapeDtypeStruct((M, D), jnp.float32),
        grid=(M // tm, Hdn // th),
        in_specs=[pl.BlockSpec((tm, D), lambda i, j: (i, 0)),
                  pl.BlockSpec((1, D), lambda i, j: (0, 0)),
                  pl.BlockSpec((D, th), lambda i, j: (0, j)),
                  pl.BlockSpec((D, th), lambda i, j: (0, j)),
                  pl.BlockSpec((th, D), lambda i, j: (j, 0))],
        out_specs=pl.BlockSpec((tm, D), lambda i, j: (i, 0)),
        scratch_shapes=[pltpu.VMEM((tm, D), jnp.float32)],
        compiler_params=pltpu.CompilerParams(
            dimension_semantics=("parallel", "arbitrary")),
    )(x, g.reshape(1, D), w1, w3, w2)


# --------------------- GQA attention (one KV group / step) ------------------

def _attn_kernel(q_ref, k_ref, v_ref, o_ref, *, scale, n_rep):
    k = k_ref[0, 0]                                       # (Skv, hd) bf16
    v = v_ref[0, 0]                                       # (Skv, hd) bf16
    for r in range(n_rep):                                # static unroll over group
        # fold 1/sqrt(hd) into the small (S, hd) q tile, not the (S, Skv) scores
        q = (q_ref[0, r].astype(jnp.float32) * scale).astype(jnp.bfloat16)
        # contract head_dim of both operands: no in-kernel k.T relayout
        s = jax.lax.dot_general(q, k, (((1,), (1,)), ((), ())),
                                preferred_element_type=jnp.float32)  # (S, Skv)
        m = jnp.max(s, axis=-1, keepdims=True)
        p = jnp.exp(s - m)
        l = jnp.sum(p, axis=-1, keepdims=True)
        o = jnp.dot(p.astype(jnp.bfloat16), v, preferred_element_type=jnp.float32)
        o_ref[0, r] = o * pl.reciprocal(l, approx=True)


def attention(q, k, v, n_rep, scale):
    """q: (B, H, S, hd) bf16; k, v: (B, Hkv, Skv, hd) bf16 -> (B, H, S, hd) f32.

    Grid = (batch, kv head group): K/V are DMA'd once per group, all n_rep
    query heads of the group are computed in that step.
    """
    B, H, S, hd = q.shape
    _, Hkv, Skv, _ = k.shape
    return pl.pallas_call(
        partial(_attn_kernel, scale=scale, n_rep=n_rep),
        out_shape=jax.ShapeDtypeStruct((B, H, S, hd), jnp.float32),
        grid=(B, Hkv),
        in_specs=[
            pl.BlockSpec((1, n_rep, S, hd), lambda b, g: (b, g, 0, 0)),
            pl.BlockSpec((1, 1, Skv, hd), lambda b, g: (b, g, 0, 0)),
            pl.BlockSpec((1, 1, Skv, hd), lambda b, g: (b, g, 0, 0)),
        ],
        out_specs=pl.BlockSpec((1, n_rep, S, hd), lambda b, g: (b, g, 0, 0)),
        compiler_params=pltpu.CompilerParams(
            dimension_semantics=("parallel", "parallel")),
    )(q, k, v)


# ------------------------------ JAX glue -----------------------------------

def permute_head_cols_for_rotary(w, n_heads, head_dim):
    """Reorder each head's output columns from interleaved (r0,i0,r1,i1,...) to
    half-split (r0,r1,...,i0,i1,...).  Applied identically to wq and wk, so the
    Q.K scores (and hence the block output) are unchanged, while rotary becomes
    a contiguous half-split rotation (no strided even/odd gathers)."""
    D = w.shape[0]
    w = w.reshape(D, n_heads, head_dim // 2, 2)
    w = jnp.concatenate([w[..., 0], w[..., 1]], axis=-1)   # (D, H, hd)
    return w.reshape(D, n_heads * head_dim)


def apply_rotary_half(x, cos, sin):
    """x: (B, S, Hx, hd) in half-split head_dim layout; cos/sin: (S, hd/2)."""
    d2 = x.shape[-1] // 2
    xr, xi = x[..., :d2], x[..., d2:]
    c = cos[None, :, None, :]
    s = sin[None, :, None, :]
    return jnp.concatenate([xr * c - xi * s, xr * s + xi * c], axis=-1)


def apply_rotary_interleaved(x, cos, sin):
    """Reference-path rotary in the original interleaved layout."""
    xr = x[..., 0::2]
    xi = x[..., 1::2]
    c = cos[None, :, None, :]
    s = sin[None, :, None, :]
    outr = xr * c - xi * s
    outi = xr * s + xi * c
    return jnp.stack([outr, outi], axis=-1).reshape(x.shape)


def make_freqs(head_dim, start_pos, seq_len, theta=10000.0):
    inv = theta ** (-jnp.arange(0, head_dim, 2, dtype=jnp.float32) / head_dim)
    t = jnp.arange(start_pos, start_pos + seq_len, dtype=jnp.float32)
    ang = jnp.outer(t, inv)                               # (S, hd/2)
    return jnp.cos(ang), jnp.sin(ang)


def prepare_params(params, cfg):
    """One-time host-side prep: permute wq/wk for half-split rotary, build the
    fused [wq|wk|wv] weight, cast matmul weights to bf16 (MXU-native)."""
    H, Hkv, hd = cfg["n_heads"], cfg["n_kv_heads"], cfg["head_dim"]
    wq = permute_head_cols_for_rotary(params["wq"], H, hd)
    wk = permute_head_cols_for_rotary(params["wk"], Hkv, hd)
    w_qkv = jnp.concatenate([wq, wk, params["wv"]], axis=1).astype(jnp.bfloat16)
    return {
        "attn_norm_w": params["attn_norm_w"],
        "ffn_norm_w": params["ffn_norm_w"],
        "w_qkv": w_qkv,
        "wo": params["wo"].astype(jnp.bfloat16),
        "w1": params["w1"].astype(jnp.bfloat16),
        "w3": params["w3"].astype(jnp.bfloat16),
        "w2": params["w2"].astype(jnp.bfloat16),
    }


def encoder_block_forward(x, prep, start_pos, cos, sin, cfg):
    B, S, D = x.shape
    H, Hkv, hd = cfg["n_heads"], cfg["n_kv_heads"], cfg["head_dim"]
    n_rep = H // Hkv
    eps = cfg["eps"]
    x2 = x.reshape(B * S, D)

    # ---- attention branch: fused RMSNorm + QKV projection (single kernel) ----
    qkv = norm_matmul(x2, prep["attn_norm_w"], prep["w_qkv"], eps)   # (B*S, Nq+2Nkv)
    nq, nkv = H * hd, Hkv * hd
    xq = qkv[:, :nq].reshape(B, S, H, hd)
    xk = qkv[:, nq:nq + nkv].reshape(B, S, Hkv, hd)
    xv = qkv[:, nq + nkv:].reshape(B, S, Hkv, hd)

    xq = apply_rotary_half(xq, cos, sin)
    xk = apply_rotary_half(xk, cos, sin)

    # KV "cache": the module re-creates a zero cache, so positions < start_pos
    # are zeros.  Avoid materializing the (max_batch, max_seq) buffer entirely.
    # TODO(synk): thread a persistent cache via input_output_aliases for real
    # in-place decode-time updates.
    if start_pos > 0:
        zpad = ((0, 0), (start_pos, 0), (0, 0), (0, 0))
        keys, values = jnp.pad(xk, zpad), jnp.pad(xv, zpad)
    else:
        keys, values = xk, xv                              # (B, kvlen, Hkv, hd)

    # Head-major layouts for the attention kernel (tiny tensors here; at scale
    # this layout would be emitted directly by the projection kernel out_spec).
    q_t = jnp.transpose(xq, (0, 2, 1, 3)).astype(jnp.bfloat16)      # (B, H,   S,  hd)
    k_t = jnp.transpose(keys, (0, 2, 1, 3)).astype(jnp.bfloat16)    # (B, Hkv, kv, hd)
    v_t = jnp.transpose(values, (0, 2, 1, 3)).astype(jnp.bfloat16)

    attn = attention(q_t, k_t, v_t, n_rep, 1.0 / math.sqrt(hd))      # (B, H, S, hd)
    attn2 = jnp.transpose(attn, (0, 2, 1, 3)).reshape(B * S, H * hd)
    attn_proj = matmul(attn2.astype(jnp.bfloat16), prep["wo"])       # (B*S, D) f32

    h = x + attn_proj.reshape(B, S, D)

    # ---- feed-forward branch: fused RMSNorm + SwiGLU + down-projection ----
    ffn = feed_forward(h.reshape(B * S, D), prep["ffn_norm_w"],
                       prep["w1"], prep["w3"], prep["w2"], eps)
    return h + ffn.reshape(B, S, D)


# ------------------------- pure-jnp reference ------------------------------

def reference_forward(x, params, start_pos, cos, sin, cfg):
    B, S, D = x.shape
    H, Hkv, hd = cfg["n_heads"], cfg["n_kv_heads"], cfg["head_dim"]
    n_rep = H // Hkv
    eps = cfg["eps"]

    def rms(v, w):
        ms = jnp.mean(v * v, axis=-1, keepdims=True)
        return w * (v * jax.lax.rsqrt(ms + eps))

    hn = rms(x, params["attn_norm_w"])
    xq = (hn @ params["wq"]).reshape(B, S, H, hd)
    xk = (hn @ params["wk"]).reshape(B, S, Hkv, hd)
    xv = (hn @ params["wv"]).reshape(B, S, Hkv, hd)
    xq = apply_rotary_interleaved(xq, cos, sin)
    xk = apply_rotary_interleaved(xk, cos, sin)

    cache_k = jnp.zeros((cfg["max_batch"], cfg["max_seq"], Hkv, hd), jnp.float32)
    cache_v = jnp.zeros_like(cache_k)
    cache_k = jax.lax.dynamic_update_slice(cache_k, xk, (0, start_pos, 0, 0))
    cache_v = jax.lax.dynamic_update_slice(cache_v, xv, (0, start_pos, 0, 0))
    keys = jnp.repeat(cache_k[:B, : start_pos + S], n_rep, axis=2)
    values = jnp.repeat(cache_v[:B, : start_pos + S], n_rep, axis=2)

    q_t = jnp.transpose(xq, (0, 2, 1, 3))
    k_t = jnp.transpose(keys, (0, 2, 1, 3))
    v_t = jnp.transpose(values, (0, 2, 1, 3))
    scores = jnp.einsum("bhqd,bhkd->bhqk", q_t, k_t) / math.sqrt(hd)
    scores = jax.nn.softmax(scores, axis=-1)
    o = jnp.einsum("bhqk,bhkd->bhqd", scores, v_t)
    o = jnp.transpose(o, (0, 2, 1, 3)).reshape(B, S, H * hd)
    h = x + o @ params["wo"]

    hn2 = rms(h, params["ffn_norm_w"])
    h1 = hn2 @ params["w1"]
    h3 = hn2 @ params["w3"]
    ffn = ((h1 * jax.nn.sigmoid(h1)) * h3) @ params["w2"]
    return h + ffn


# --------------------------------- main ------------------------------------

if __name__ == "__main__":
    # Small ModelArgs-consistent config.
    B, S, D = 2, 8, 256
    n_heads, n_kv_heads = 8, 4
    head_dim = D // n_heads                               # 32
    multiple_of = 128
    hidden = int(2 * (4 * D) / 3)
    hidden = multiple_of * ((hidden + multiple_of - 1) // multiple_of)  # 768
    cfg = dict(n_heads=n_heads, n_kv_heads=n_kv_heads, head_dim=head_dim,
               eps=1e-5, max_batch=B, max_seq=16)
    start_pos = 0

    key = jax.random.PRNGKey(0)
    ks = jax.random.split(key, 9)
    scale = 0.02
    params = {
        "attn_norm_w": jnp.ones((D,), jnp.float32),       # RMSNorm init = ones
        "ffn_norm_w": jnp.ones((D,), jnp.float32),
        # Linear weights stored as (in, out) so y = x @ W.
        "wq": scale * jax.random.normal(ks[1], (D, n_heads * head_dim), jnp.float32),
        "wk": scale * jax.random.normal(ks[2], (D, n_kv_heads * head_dim), jnp.float32),
        "wv": scale * jax.random.normal(ks[3], (D, n_kv_heads * head_dim), jnp.float32),
        "wo": scale * jax.random.normal(ks[4], (n_heads * head_dim, D), jnp.float32),
        "w1": scale * jax.random.normal(ks[5], (D, hidden), jnp.float32),
        "w3": scale * jax.random.normal(ks[6], (D, hidden), jnp.float32),
        "w2": scale * jax.random.normal(ks[7], (hidden, D), jnp.float32),
    }
    prep = prepare_params(params, cfg)

    x = jax.random.normal(ks[0], (B, S, D), jnp.float32)
    cos, sin = make_freqs(head_dim, start_pos, S)

    out = encoder_block_forward(x, prep, start_pos, cos, sin, cfg)
    out = jax.block_until_ready(out)

    ref = reference_forward(x, params, start_pos, cos, sin, cfg)
    assert out.shape == (B, S, D) and out.dtype == jnp.float32
    # bf16 MXU inputs -> slightly looser tolerance than the pure-f32 reference.
    assert jnp.allclose(out, ref, rtol=2e-2, atol=2e-2), "mismatch vs reference"

    print("KERNEL_OK")
</pallas_src>

<mosaic_0001>
module attributes {stable_mosaic.version = 11 : i64} {
  func.func @_norm_matmul_kernel(%arg0: i32, %arg1: i32, %arg2: memref<16x256xf32, #tpu.memory_space<vmem>>, %arg3: memref<1x256xf32, #tpu.memory_space<vmem>>, %arg4: memref<256x256xbf16, #tpu.memory_space<vmem>>, %arg5: memref<16x256xf32, #tpu.memory_space<vmem>>) attributes {dimension_semantics = [#tpu.dimension_semantics<parallel>, #tpu.dimension_semantics<parallel>], iteration_bounds = array<i64: 1, 2>, scalar_prefetch = 0 : i64, scratch_operands = 0 : i64, tpu.core_type = #tpu.core_type<tc>, window_params = [{transform_indices = @transform_0, window_bounds = array<i64: 16, 256>}, {pipeline_mode = #tpu.pipeline_mode<synchronous>, transform_indices = @transform_1, window_bounds = array<i64: 1, 256>}, {transform_indices = @transform_2, window_bounds = array<i64: 256, 256>}, {transform_indices = @transform_3, window_bounds = array<i64: 16, 256>}]} {
    %c0 = arith.constant 0 : index
    %c0_0 = arith.constant 0 : index
    %0 = vector.load %arg2[%c0, %c0_0] : memref<16x256xf32, #tpu.memory_space<vmem>>, vector<16x256xf32>
    %1 = arith.mulf %0, %0 : vector<16x256xf32>
    %cst = arith.constant dense<0.000000e+00> : vector<16xf32>
    %2 = vector.multi_reduction <add>, %1, %cst [1] : vector<16x256xf32> to vector<16xf32>
    %3 = vector.shape_cast %2 : vector<16xf32> to vector<16x1xf32>
    %cst_1 = arith.constant 2.560000e+02 : f32
    %4 = vector.broadcast %cst_1 : f32 to vector<16x1xf32>
    %5 = arith.divf %3, %4 : vector<16x1xf32>
    %cst_2 = arith.constant 9.99999974E-6 : f32
    %6 = vector.broadcast %cst_2 : f32 to vector<16x1xf32>
    %7 = arith.addf %5, %6 : vector<16x1xf32>
    %8 = math.rsqrt %7 : vector<16x1xf32>
    %9 = vector.broadcast %8 : vector<16x1xf32> to vector<16x256xf32>
    %10 = arith.mulf %0, %9 : vector<16x256xf32>
    %c0_3 = arith.constant 0 : index
    %c0_4 = arith.constant 0 : index
    %11 = vector.load %arg3[%c0_3, %c0_4] : memref<1x256xf32, #tpu.memory_space<vmem>>, vector<1x256xf32>
    %12 = vector.broadcast %11 : vector<1x256xf32> to vector<16x256xf32>
    %13 = arith.mulf %10, %12 : vector<16x256xf32>
    %14 = arith.truncf %13 : vector<16x256xf32> to vector<16x256xbf16>
    %c0_5 = arith.constant 0 : index
    %c0_6 = arith.constant 0 : index
    %15 = vector.load %arg4[%c0_5, %c0_6] : memref<256x256xbf16, #tpu.memory_space<vmem>>, vector<256x256xbf16>
    %cst_7 = arith.constant dense<0.000000e+00> : vector<16x256xf32>
    %16 = tpu.matmul %14, %15, %cst_7 {dimension_numbers = #tpu.dot_dimension_numbers<[1], [0], [0], [1], [0, 0, 1, 1], [], []>} : vector<16x256xbf16>, vector<256x256xbf16>, vector<16x256xf32> -> vector<16x256xf32>
    %c0_8 = arith.constant 0 : index
    %c0_9 = arith.constant 0 : index
    %17 = vector.load %arg5[%c0_8, %c0_9] : memref<16x256xf32, #tpu.memory_space<vmem>>, vector<16x256xf32>
    tpu.vector_store %arg5[%c0_8, %c0_9], %16 {strides = array<i32>} : memref<16x256xf32, #tpu.memory_space<vmem>>, vector<16x256xf32>,
    return
  }
  func.func @transform_0(%arg0: i32, %arg1: i32) -> (i32, i32) {
    %c0_i32 = arith.constant 0 : i32
    %c0_i32_0 = arith.constant 0 : i32
    return %arg0, %c0_i32 : i32, i32
  }
  func.func @transform_1(%arg0: i32, %arg1: i32) -> (i32, i32) {
    %c0_i32 = arith.constant 0 : i32
    %c0_i32_0 = arith.constant 0 : i32
    %c0_i32_1 = arith.constant 0 : i32
    return %c0_i32, %c0_i32_0 : i32, i32
  }
  func.func @transform_2(%arg0: i32, %arg1: i32) -> (i32, i32) {
    %c0_i32 = arith.constant 0 : i32
    %c0_i32_0 = arith.constant 0 : i32
    return %c0_i32, %arg1 : i32, i32
  }
  func.func @transform_3(%arg0: i32, %arg1: i32) -> (i32, i32) {
    %c0_i32 = arith.constant 0 : i32
    return %arg0, %arg1 : i32, i32
  }
}

</mosaic_0001>

<llo_original>
// kernel: tpu_custom_call.1
$region0: #{tpu_custom_call.1}
  #allocation0 [shape = 'u32[]', space=smem, size = 0x4, offset = 0x4, fixed_abs, tag = 'smem constant byte address 0x4 - core index']
  #allocation1 [shape = 'u32[144,128]{1,0:T(1,128)}', space=vmem, size = 0x12000, scoped, tag = 'internal scratch']
  %s0 = inlined_call_operand.hbm [shape: f32[16,256], index: 0, kind: input, shape index: {}]
  %s1 = inlined_call_operand.hbm [shape: f32[1,256], index: 1, kind: input, shape index: {}]
  %s2 = inlined_call_operand.hbm [shape: bf16[256,512], index: 2, kind: input, shape index: {}]
  %s3 = inlined_call_operand.hbm [shape: f32[16,512], index: 3, kind: output, shape index: {}]
  %s4 = sld [smem:[#allocation0]]
  $region57: #{tpu_custom_call.1} parent=0
    _
  %s6 = ssub.s32 1, %s4
  %s7 = scalar_select 0, %s6, %s4
  $region1: #{tpu_custom_call.1} parent=0
    #allocation2 [shape = 'u8[16384]{0}', space=vmem, size = 0x4000, scoped, tag = 'input window, operand 0, single buffered']
    #allocation3 [shape = 's32[2]{0}', space=sflag, size = 0x8, scoped, tag = 'scoped memory for tpu_custom_call.1']
    #allocation4 [shape = 's32[2]{0}', space=sflag, size = 0x8, scoped, tag = 'scoped memory for tpu_custom_call.1']
    #allocation5 [shape = 'u8[1024]{0}', space=vmem, size = 0x400, scoped, tag = 'input window, operand 1, single buffered']
    #allocation6 [shape = 's32[1]{0}', space=sflag, size = 0x4, scoped, tag = 'scoped memory for tpu_custom_call.1']
    #allocation7 [shape = 'u8[262144]{0}', space=vmem, size = 0x40000, scoped, tag = 'input window, operand 2']
    #allocation8 [shape = 'u8[32768]{0}', space=vmem, size = 0x8000, scoped, tag = 'output window, operand 0']
    %8 = vsyncpa [#allocation3], 0
    %9 = vsyncpa [#allocation6], 0
    %10 = vsyncpa [#allocation4], 0
    %s11 = scalar_lea.sflag [#allocation4], 1
    %12 = vsyncpa %s11, 0
    loop: start=0, step=1, limit=4
    $region2: #{tpu_custom_call.1} parent=1 // loop_pre_header
      _
    $region3: #{tpu_custom_call.1} parent=1 // loop_header
      %s14 = sphi 0, %s18
      %p15 = scmp.ge.s32.totalorder %s14, 4
      %s21 = sphi 0, %s33
      %s22 = sphi 0, %s29
      %s23 = sphi 0, %s21
      %s24 = sphi 0, %s22
      %s25 = sphi 0, %s23
      %s26 = sphi 0, %s24
      %s36 = sphi 0, %s38
      %s39 = sphi 0, %s36
      %s40 = sphi 0, %s39
      %s56 = sphi 0, %s40
      %s60 = sphi 0, %s60
      %s62 = sphi 0, %s60
      %s63 = sphi 0, %s62
      %s77 = sphi 0, %s63
      %s83 = sphi 0, %s85
      %s86 = sphi 0, %s83
      %s87 = sphi 0, %s86
      %s103 = sphi 0, %s87
      %s111 = sphi 0, %s113
      %s114 = sphi 0, %s111
      %s115 = sphi 0, %s114
      %s131 = sphi 0, %s115
    $region4: #{tpu_custom_call.1} parent=1 // loop_header_branch
      %17 = sbr.rel (%p15) target = $region8
    $region5: #{tpu_custom_call.1} parent=1 // loop_body
      %s19 = ssub.s32 %s14, 1
      %s20 = ssub.s32 %s14, 2
      %s27 = sadd.s32 1, %s22
      %p28 = scmp.ge.s32.totalorder %s27, 2
      %s29 = scalar_select %p28, 0, %s27
      %s30 = sadd.s32 1, %s21
      %s31 = scalar_select %p28, %s30, %s21
      %p32 = scmp.ge.s32.totalorder %s31, 1
      %s33 = scalar_select %p32, 0, %s31
      %s34 = ssub.s32 %s21, %s33
      %p35 = scmp.eq.s32.totalorder %s34, 0
      %s37 = sadd.s32 %s36, 1
      %s38 = scalar_select %p35, %s36, %s37
      %p41 = pneg %p35
      %p42 = scmp.eq.s32.totalorder %s14, 1
      %p43 = por %p41, %p42
      %p44 = scmp.ne.s32.totalorder %s36, %s39
      %p45 = scmp.eq.s32.totalorder %s14, 0
      %p46 = por %p44, %p45
      %p47 = scmp.ne.s32.totalorder %s36, %s39
      %p48 = scmp.eq.s32.totalorder %s19, 1
      %p49 = por %p47, %p48
      %p50 = scmp.ne.s32.totalorder %s39, %s40
      %p51 = scmp.eq.s32.totalorder %s19, 0
      %p52 = por %p50, %p51
      %p53 = scmp.ne.s32.totalorder %s39, %s40
      %p54 = scmp.eq.s32.totalorder %s20, 1
      %p55 = por %p53, %p54
      %p57 = scmp.ne.s32.totalorder %s40, %s56
      %p58 = scmp.eq.s32.totalorder %s20, 0
      %p59 = por %p57, %p58
      %s61 = sadd.s32 %s60, 1
      %p64 = scmp.eq.s32.totalorder %s14, 1
      %p65 = scmp.ne.s32.totalorder %s60, %s62
      %p66 = scmp.eq.s32.totalorder %s14, 0
      %p67 = por %p65, %p66
      %p68 = scmp.ne.s32.totalorder %s60, %s62
      %p69 = scmp.eq.s32.totalorder %s19, 1
      %p70 = por %p68, %p69
      %p71 = scmp.ne.s32.totalorder %s62, %s63
      %p72 = scmp.eq.s32.totalorder %s19, 0
      %p73 = por %p71, %p72
      %p74 = scmp.ne.s32.totalorder %s62, %s63
      %p75 = scmp.eq.s32.totalorder %s20, 1
      %p76 = por %p74, %p75
      %p78 = scmp.ne.s32.totalorder %s63, %s77
      %p79 = scmp.eq.s32.totalorder %s20, 0
      %p80 = por %p78, %p79
      %s81 = ssub.s32 %s22, %s29
      %p82 = scmp.eq.s32.totalorder %s81, 0
      %s84 = sadd.s32 %s83, 1
      %s85 = scalar_select %p82, %s83, %s84
      %p88 = pneg %p82
      %p89 = scmp.eq.s32.totalorder %s14, 1
      %p90 = por %p88, %p89
      %p91 = scmp.ne.s32.totalorder %s83, %s86
      %p92 = scmp.eq.s32.totalorder %s14, 0
      %p93 = por %p91, %p92
      %p94 = scmp.ne.s32.totalorder %s83, %s86
      %p95 = scmp.eq.s32.totalorder %s19, 1
      %p96 = por %p94, %p95
      %p97 = scmp.ne.s32.totalorder %s86, %s87
      %p98 = scmp.eq.s32.totalorder %s19, 0
      %p99 = por %p97, %p98
      %p100 = scmp.ne.s32.totalorder %s86, %s87
      %p101 = scmp.eq.s32.totalorder %s20, 1
      %p102 = por %p100, %p101
      %p104 = scmp.ne.s32.totalorder %s87, %s103
      %p105 = scmp.eq.s32.totalorder %s20, 0
      %p106 = por %p104, %p105
      %s107 = ssub.s32 %s21, %s33
      %s108 = ssub.s32 %s22, %s29
      %s109 = sor.u32 %s107, %s108
      %p110 = scmp.eq.s32.totalorder %s109, 0
      %s112 = sadd.s32 %s111, 1
      %s113 = scalar_select %p110, %s111, %s112
      %p116 = pneg %p110
      %p117 = scmp.eq.s32.totalorder %s14, 1
      %p118 = por %p116, %p117
      %p119 = scmp.ne.s32.totalorder %s111, %s114
      %p120 = scmp.eq.s32.totalorder %s14, 0
      %p121 = por %p119, %p120
      %p122 = scmp.ne.s32.totalorder %s111, %s114
      %p123 = scmp.eq.s32.totalorder %s19, 1
      %p124 = por %p122, %p123
      %p125 = scmp.ne.s32.totalorder %s114, %s115
      %p126 = scmp.eq.s32.totalorder %s19, 0
      %p127 = por %p125, %p126
      %p128 = scmp.ne.s32.totalorder %s114, %s115
      %p129 = scmp.eq.s32.totalorder %s20, 1
      %p130 = por %p128, %p129
      %p132 = scmp.ne.s32.totalorder %s115, %s131
      %p133 = scmp.eq.s32.totalorder %s20, 0
      %p134 = por %p132, %p133
      %p135 = scmp.le.s32.totalorder 1, %s14
      %p136 = scmp.lt.s32.totalorder %s14, 3
      %p137 = pnand %p135, %p136
      %p138 = pneg %p137
      // Predicated region
      $region9: #{tpu_custom_call.1} parent=5 // pred_check
        _
      $region10: #{tpu_custom_call.1} parent=5 // pred_check_branch
        %140 = sbr.rel (%p137) target = $region12
      $region11: #{tpu_custom_call.1} parent=5 // pred_region
        %s141 = ssub.s32 %s14, 1
        // Predicated region
        $region13: #{tpu_custom_call.1} parent=11 // pred_check
          %p142 = pneg %p52
        $region14: #{tpu_custom_call.1} parent=11 // pred_check_branch
          %144 = sbr.rel (%p142) target = $region16
        $region15: #{tpu_custom_call.1} parent=11 // pred_region
          %s145 = smul.u32 2, %s23
          %s147 = ssub.s32 512, 512
          %148 = vsyncadd [#allocation3], %s147
          %s149 = smul.addr %s145, 2
          %s150 = smul.addr %s149, 128
          %s151 = scalar_lea.hbm %s0, %s150
          %s152 = sshll.u32 [#allocation2], 4
          %s153 = int_to_ptr.vmem [resolvable:$true] %s152
          %158 = dma.hbm_to_vmem [thread:$0]  %s151, 512, %s153, [#allocation3], 256, 256, 16
        $region16: #{tpu_custom_call.1} parent=11 // pred_fallthru
          _
        // Predicated region
        $region17: #{tpu_custom_call.1} parent=11 // pred_check
          %p159 = pneg %p73
        $region18: #{tpu_custom_call.1} parent=11 // pred_check_branch
          %161 = sbr.rel (%p159) target = $region20
        $region19: #{tpu_custom_call.1} parent=11 // pred_region
          %s163 = ssub.s32 32, 32
          %164 = vsyncadd [#allocation6], %s163
          %s166 = sshll.u32 [#allocation5], 4
          %s167 = int_to_ptr.vmem [resolvable:$true] %s166
          %169 = dma.hbm_to_vmem [thread:$0]  %s1, 32, %s167, [#allocation6]
        $region20: #{tpu_custom_call.1} parent=11 // pred_fallthru
          _
      $region12: #{tpu_custom_call.1} parent=5 // pred_fallthru
        _
      %p170 = scmp.lt.s32.totalorder %s14, 2
      // Predicated region
      $region21: #{tpu_custom_call.1} parent=5 // pred_check
        %p171 = pneg %p170
      $region22: #{tpu_custom_call.1} parent=5 // pred_check_branch
        %173 = sbr.rel (%p171) target = $region24
      $region23: #{tpu_custom_call.1} parent=5 // pred_region
        // Predicated region
        $region25: #{tpu_custom_call.1} parent=23 // pred_check
          %p174 = pneg %p93
        $region26: #{tpu_custom_call.1} parent=23 // pred_check_branch
          %176 = sbr.rel (%p174) target = $region28
        $region27: #{tpu_custom_call.1} parent=23 // pred_region
          %s177 = sand.u32 %s14, 1
          %s178 = scalar_lea.sflag [#allocation3], %s177
          %s179 = sand.u32 %s83, 1
          %s180 = smul.addr %s179, 256
          %s181 = scalar_lea.vmem [#allocation7], %s180
          %s182 = smul.u32 2, %s22
          %s184 = ssub.s32 4096, 4096
          %185 = vsyncadd %s178, %s184
          %s186 = smul.addr %s182, 64
          %s187 = scalar_lea.hbm %s2, %s186
          %s188 = sshll.u32 %s181, 4
          %s189 = int_to_ptr.vmem [resolvable:$true] %s188
          %194 = dma.hbm_to_vmem [thread:$0]  %s187, 4096, %s189, %s178, 256, 128, 8
        $region28: #{tpu_custom_call.1} parent=23 // pred_fallthru
          _
      $region24: #{tpu_custom_call.1} parent=5 // pred_fallthru
        _
      %p195 = scmp.le.s32.totalorder 1, %s14
      %p196 = scmp.lt.s32.totalorder %s14, 3
      %p197 = pnand %p195, %p196
      %p198 = pneg %p197
      // Predicated region
      $region29: #{tpu_custom_call.1} parent=5 // pred_check
        _
      $region30: #{tpu_custom_call.1} parent=5 // pred_check_branch
        %200 = sbr.rel (%p197) target = $region32
      $region31: #{tpu_custom_call.1} parent=5 // pred_region
        %s201 = ssub.s32 %s14, 1
        // Predicated region
        $region33: #{tpu_custom_call.1} parent=31 // pred_check
          %p202 = pneg %p52
        $region34: #{tpu_custom_call.1} parent=31 // pred_check_branch
          %204 = sbr.rel (%p202) target = $region36
        $region35: #{tpu_custom_call.1} parent=31 // pred_region
          %205 = dma.done [#allocation3], 512
        $region36: #{tpu_custom_call.1} parent=31 // pred_fallthru
          _
        // Predicated region
        $region37: #{tpu_custom_call.1} parent=31 // pred_check
          %p206 = pneg %p73
        $region38: #{tpu_custom_call.1} parent=31 // pred_check_branch
          %208 = sbr.rel (%p206) target = $region40
        $region39: #{tpu_custom_call.1} parent=31 // pred_region
          %209 = dma.done [#allocation6], 32
        $region40: #{tpu_custom_call.1} parent=31 // pred_fallthru
          _
        %s210 = sand.u32 %s19, 1
        %s211 = scalar_lea.sflag [#allocation3], %s210
        %s212 = sand.u32 %s86, 1
        %s213 = smul.addr %s212, 256
        %s214 = scalar_lea.vmem [#allocation7], %s213
        // Predicated region
        $region41: #{tpu_custom_call.1} parent=31 // pred_check
          %p215 = pneg %p99
        $region42: #{tpu_custom_call.1} parent=31 // pred_check_branch
          %217 = sbr.rel (%p215) target = $region44
        $region43: #{tpu_custom_call.1} parent=31 // pred_region
          %218 = dma.done %s211, 4096
        $region44: #{tpu_custom_call.1} parent=31 // pred_fallthru
          _
        %p219 = pneg %p52
        %p220 = pneg %p49
        %p221 = pneg %p73
        %p222 = pneg %p70
        %s223 = sand.u32 %s19, 1
        %s224 = scalar_lea.sflag [#allocation3], %s223
        %s225 = sand.u32 %s86, 1
        %s226 = smul.addr %s225, 256
        %s227 = scalar_lea.vmem [#allocation7], %s226
        %p228 = pneg %p99
        %p229 = pneg %p96
        %p230 = pneg %p127
        %p231 = pneg %p124
        %s232 = sand.u32 %s114, 1
        %s233 = scalar_lea.sflag [#allocation4], %s232
        %s234 = sand.u32 %s114, 1
        %s235 = smul.addr %s234, 32
        %s236 = scalar_lea.vmem [#allocation8], %s235
        %s237 = smul.u32 2, %s23
        %s238 = smul.u32 2, %s24
        %s239 = smul.u32 2, %s23
        %s240 = smul.u32 2, %s24
        %v241 = vld [vmem:[#allocation2] sm:$0xff]
        %v242 = vld [vmem:[#allocation2 + $0x8] sm:$0xff]
        %v243 = vld [vmem:[#allocation2 + $0x10] sm:$0xff]
        %v244 = vld [vmem:[#allocation2 + $0x18] sm:$0xff]
        %v245 = vmul.f32 %v241, %v241
        %v246 = vmul.f32 %v242, %v242
        %v247 = vmul.f32 %v243, %v243
        %v248 = vmul.f32 %v244, %v244
        %v249 = vadd.f32 %v245, %v246
        %250 = vadd.xlane.f32.xlu0 %v249
        %v251 = vpop.xlane.xlu0 %250
        %v252 = vadd.f32 %v247, %v248
        %253 = vadd.xlane.f32.xlu0 %v252
        %v254 = vpop.xlane.xlu0 %253
        %v255 = vrcp.pop 256.0
        %v256 = vmul.f32 %v251, %v255
        %v257 = vmul.f32 %v254, %v255
        %v258 = vadd.f32 %v256, 1e-05
        %v259 = vadd.f32 %v257, 1e-05
        %v260 = vrsqrt.pop %v258
        %v261 = vrsqrt.pop %v259
        %v262 = vmul.f32 %v241, %v260
        %v263 = vmul.f32 %v242, %v260
        %v264 = vmul.f32 %v243, %v261
        %v265 = vmul.f32 %v244, %v261
        %v266 = vld [vmem:[#allocation5] sm:$0x3]
        %v268 = vlaneseq
        %v269 = vshrl.u32 %v268, 7
        %v270 = vsub.s32 0, %v269
        %v271 = vrot.slane %v266, %v270
        %v272 = vlaneseq
        %v273 = vshrl.u32 %v272, 7
        %v274 = vsub.s32 1, %v273
        %v275 = vrot.slane %v266, %v274
        %v278 = vmul.f32 %v262, %v271
        %v279 = vmul.f32 %v263, %v275
        %v280 = vmul.f32 %v264, %v271
        %v281 = vmul.f32 %v265, %v275
        %v282 = vpack.c.bf16 %v280, %v278
        %v283 = vpack.c.bf16 %v281, %v279
        %v284 = vld [vmem:[%s214] sm:$0xff]
        %v285 = vld [vmem:[%s214 + $0x8] sm:$0xff]
        %v286 = vld [vmem:[%s214 + $0x10] sm:$0xff]
        %v287 = vld [vmem:[%s214 + $0x18] sm:$0xff]
        %v288 = vld [vmem:[%s214 + $0x20] sm:$0xff]
        %v289 = vld [vmem:[%s214 + $0x28] sm:$0xff]
        %v290 = vld [vmem:[%s214 + $0x30] sm:$0xff]
        %v291 = vld [vmem:[%s214 + $0x38] sm:$0xff]
        %v292 = vld [vmem:[%s214 + $0x40] sm:$0xff]
        %v293 = vld [vmem:[%s214 + $0x48] sm:$0xff]
        %v294 = vld [vmem:[%s214 + $0x50] sm:$0xff]
        %v295 = vld [vmem:[%s214 + $0x58] sm:$0xff]
        %v296 = vld [vmem:[%s214 + $0x60] sm:$0xff]
        %v297 = vld [vmem:[%s214 + $0x68] sm:$0xff]
        %v298 = vld [vmem:[%s214 + $0x70] sm:$0xff]
        %v299 = vld [vmem:[%s214 + $0x78] sm:$0xff]
        %v300 = vld [vmem:[%s214 + $0x80] sm:$0xff]
        %v301 = vld [vmem:[%s214 + $0x88] sm:$0xff]
        %v302 = vld [vmem:[%s214 + $0x90] sm:$0xff]
        %v303 = vld [vmem:[%s214 + $0x98] sm:$0xff]
        %v304 = vld [vmem:[%s214 + $0xa0] sm:$0xff]
        %v305 = vld [vmem:[%s214 + $0xa8] sm:$0xff]
        %v306 = vld [vmem:[%s214 + $0xb0] sm:$0xff]
        %v307 = vld [vmem:[%s214 + $0xb8] sm:$0xff]
        %v308 = vld [vmem:[%s214 + $0xc0] sm:$0xff]
        %v309 = vld [vmem:[%s214 + $0xc8] sm:$0xff]
        %v310 = vld [vmem:[%s214 + $0xd0] sm:$0xff]
        %v311 = vld [vmem:[%s214 + $0xd8] sm:$0xff]
        %v312 = vld [vmem:[%s214 + $0xe0] sm:$0xff]
        %v313 = vld [vmem:[%s214 + $0xe8] sm:$0xff]
        %v314 = vld [vmem:[%s214 + $0xf0] sm:$0xff]
        %v315 = vld [vmem:[%s214 + $0xf8] sm:$0xff]
        %v348 = vunpack.c.l.b16 %v284
        %v349 = vunpack.c.h.b16 %v284
        %v350 = vunpack.c.l.b16 %v285
        %v351 = vunpack.c.h.b16 %v285
        %v352 = vunpack.c.l.b16 %v286
        %v353 = vunpack.c.h.b16 %v286
        %v354 = vunpack.c.l.b16 %v287
        %v355 = vunpack.c.h.b16 %v287
        %v356 = vunpack.c.l.b16 %v288
        %v357 = vunpack.c.h.b16 %v288
        %v358 = vunpack.c.l.b16 %v289
        %v359 = vunpack.c.h.b16 %v289
        %v360 = vunpack.c.l.b16 %v290
        %v361 = vunpack.c.h.b16 %v290
        %v362 = vunpack.c.l.b16 %v291
        %v363 = vunpack.c.h.b16 %v291
        %v364 = vunpack.c.l.b16 %v292
        %v365 = vunpack.c.h.b16 %v292
        %v366 = vunpack.c.l.b16 %v293
        %v367 = vunpack.c.h.b16 %v293
        %v368 = vunpack.c.l.b16 %v294
        %v369 = vunpack.c.h.b16 %v294
        %v370 = vunpack.c.l.b16 %v295
        %v371 = vunpack.c.h.b16 %v295
        %v372 = vunpack.c.l.b16 %v296
        %v373 = vunpack.c.h.b16 %v296
        %v374 = vunpack.c.l.b16 %v297
        %v375 = vunpack.c.h.b16 %v297
        %v376 = vunpack.c.l.b16 %v298
        %v377 = vunpack.c.h.b16 %v298
        %v378 = vunpack.c.l.b16 %v299
        %v379 = vunpack.c.h.b16 %v299
        %v380 = vunpack.c.l.b16 %v300
        %v381 = vunpack.c.h.b16 %v300
        %v382 = vunpack.c.l.b16 %v301
        %v383 = vunpack.c.h.b16 %v301
        %v384 = vunpack.c.l.b16 %v302
        %v385 = vunpack.c.h.b16 %v302
        %v386 = vunpack.c.l.b16 %v303
        %v387 = vunpack.c.h.b16 %v303
        %v388 = vunpack.c.l.b16 %v304
        %v389 = vunpack.c.h.b16 %v304
        %v390 = vunpack.c.l.b16 %v305
        %v391 = vunpack.c.h.b16 %v305
        %v392 = vunpack.c.l.b16 %v306
        %v393 = vunpack.c.h.b16 %v306
        %v394 = vunpack.c.l.b16 %v307
        %v395 = vunpack.c.h.b16 %v307
        %v396 = vunpack.c.l.b16 %v308
        %v397 = vunpack.c.h.b16 %v308
        %v398 = vunpack.c.l.b16 %v309
        %v399 = vunpack.c.h.b16 %v309
        %v400 = vunpack.c.l.b16 %v310
        %v401 = vunpack.c.h.b16 %v310
        %v402 = vunpack.c.l.b16 %v311
        %v403 = vunpack.c.h.b16 %v311
        %v404 = vunpack.c.l.b16 %v312
        %v405 = vunpack.c.h.b16 %v312
        %v406 = vunpack.c.l.b16 %v313
        %v407 = vunpack.c.h.b16 %v313
        %v408 = vunpack.c.l.b16 %v314
        %v409 = vunpack.c.h.b16 %v314
        %v410 = vunpack.c.l.b16 %v315
        %v411 = vunpack.c.h.b16 %v315
        %v412 = vpack.c.b16 %v350, %v348
        %v413 = vpack.c.b16 %v351, %v349
        %v414 = vpack.c.b16 %v354, %v352
        %v415 = vpack.c.b16 %v355, %v353
        %v416 = vpack.c.b16 %v358, %v356
        %v417 = vpack.c.b16 %v359, %v357
        %v418 = vpack.c.b16 %v362, %v360
        %v419 = vpack.c.b16 %v363, %v361
        %v420 = vpack.c.b16 %v366, %v364
        %v421 = vpack.c.b16 %v367, %v365
        %v422 = vpack.c.b16 %v370, %v368
        %v423 = vpack.c.b16 %v371, %v369
        %v424 = vpack.c.b16 %v374, %v372
        %v425 = vpack.c.b16 %v375, %v373
        %v426 = vpack.c.b16 %v378, %v376
        %v427 = vpack.c.b16 %v379, %v377
        %v428 = vpack.c.b16 %v382, %v380
        %v429 = vpack.c.b16 %v383, %v381
        %v430 = vpack.c.b16 %v386, %v384
        %v431 = vpack.c.b16 %v387, %v385
        %v432 = vpack.c.b16 %v390, %v388
        %v433 = vpack.c.b16 %v391, %v389
        %v434 = vpack.c.b16 %v394, %v392
        %v435 = vpack.c.b16 %v395, %v393
        %v436 = vpack.c.b16 %v398, %v396
        %v437 = vpack.c.b16 %v399, %v397
        %v438 = vpack.c.b16 %v402, %v400
        %v439 = vpack.c.b16 %v403, %v401
        %v440 = vpack.c.b16 %v406, %v404
        %v441 = vpack.c.b16 %v407, %v405
        %v442 = vpack.c.b16 %v410, %v408
        %v443 = vpack.c.b16 %v411, %v409
        %476 = vmatprep.subr.bf16.mxu0 %v427
        %477 = vmatpush1.bf16.msra.mxu0 %v426
        %478 = vmatprep.subr.bf16.mxu0 %v425
        %479 = vmatpush1.bf16.msra.mxu0 %v424
        %480 = vmatprep.subr.bf16.mxu0 %v423
        %481 = vmatpush1.bf16.msra.mxu0 %v422
        %482 = vmatprep.subr.bf16.mxu0 %v421
        %483 = vmatpush1.bf16.msra.mxu0 %v420
        %484 = vmatprep.subr.bf16.mxu0 %v419
        %485 = vmatpush1.bf16.msra.mxu0 %v418
        %486 = vmatprep.subr.bf16.mxu0 %v417
        %487 = vmatpush1.bf16.msra.mxu0 %v416
        %488 = vmatprep.subr.bf16.mxu0 %v415
        %489 = vmatpush1.bf16.msra.mxu0 %v414
        %490 = vmatprep.subr.bf16.mxu0 %v413
        %491 = vmatpush1.bf16.msra.mxu0 %v412
        %492 = vmatprep.subr.bf16.mxu0 %v443
        %493 = vmatpush2.bf16.msra.mxu0 %v442
        %494 = vmatprep.subr.bf16.mxu0 %v441
        %495 = vmatpush2.bf16.msra.mxu0 %v440
        %496 = vmatprep.subr.bf16.mxu0 %v439
        %497 = vmatpush2.bf16.msra.mxu0 %v438
        %498 = vmatprep.subr.bf16.mxu0 %v437
        %499 = vmatpush2.bf16.msra.mxu0 %v436
        %500 = vmatprep.subr.bf16.mxu0 %v435
        %501 = vmatpush2.bf16.msra.mxu0 %v434
        %502 = vmatprep.subr.bf16.mxu0 %v433
        %503 = vmatpush2.bf16.msra.mxu0 %v432
        %504 = vmatprep.subr.bf16.mxu0 %v431
        %505 = vmatpush2.bf16.msra.mxu0 %v430
        %506 = vmatprep.subr.bf16.mxu0 %v429
        %507 = vmatpush2.bf16.msra.mxu0 %v428
        %508 = vmatprep.mubr.bf16.mxu0 %v283
        %509 = vmatmul.mubr.bf16.gmra.mxu0 %v282
        %v510 = vpop.f32.mrf.mxu0
        %v511 = vadd.f32 0.0, %v510
        %v512 = vpop.f32.mrf.mxu0
        %v513 = vadd.f32 0.0, %v512
        %v514 = vpop.f32.mrf.mxu0
        %v515 = vadd.f32 0.0, %v514
        %v516 = vpop.f32.mrf.mxu0
        %v517 = vadd.f32 0.0, %v516
        %518 = vdwg.mxu0
        %519 = vst [vmem:[%s236] sm:$0xff] %v511
        %520 = vst [vmem:[%s236 + $0x8] sm:$0xff] %v513
        %521 = vst [vmem:[%s236 + $0x10] sm:$0xff] %v515
        %522 = vst [vmem:[%s236 + $0x18] sm:$0xff] %v517
        %s523 = sand.u32 %s114, 1
        %s524 = scalar_lea.sflag [#allocation4], %s523
        %s525 = sand.u32 %s114, 1
        %s526 = smul.addr %s525, 32
        %s527 = scalar_lea.vmem [#allocation8], %s526
        // Predicated region
        $region45: #{tpu_custom_call.1} parent=31 // pred_check
          %p528 = pneg %p124
        $region46: #{tpu_custom_call.1} parent=31 // pred_check_branch
          %530 = sbr.rel (%p528) target = $region48
        $region47: #{tpu_custom_call.1} parent=31 // pred_region
          %s531 = smul.u32 2, %s23
          %s532 = smul.u32 2, %s24
          %s534 = ssub.s32 512, 512
          %535 = vsyncadd %s524, %s534
          %s536 = smul.addr %s531, 4
          %s537 = sadd.s32 %s532, %s536
          %s538 = smul.addr %s537, 128
          %s539 = scalar_lea.hbm %s3, %s538
          %s540 = sshll.u32 %s527, 4
          %s541 = int_to_ptr.vmem [resolvable:$true] %s540
          %546 = dma.vmem_to_hbm [thread:$0]  %s541, 512, %s539, %s524, 256, 512, 16
        $region48: #{tpu_custom_call.1} parent=31 // pred_fallthru
          _
      $region32: #{tpu_custom_call.1} parent=5 // pred_fallthru
        _
      %p547 = scmp.le.s32.totalorder 2, %s14
      // Predicated region
      $region49: #{tpu_custom_call.1} parent=5 // pred_check
        %p548 = pneg %p547
      $region50: #{tpu_custom_call.1} parent=5 // pred_check_branch
        %550 = sbr.rel (%p548) target = $region52
      $region51: #{tpu_custom_call.1} parent=5 // pred_region
        %s551 = ssub.s32 %s14, 2
        // Predicated region
        $region53: #{tpu_custom_call.1} parent=51 // pred_check
          %p552 = pneg %p130
        $region54: #{tpu_custom_call.1} parent=51 // pred_check_branch
          %554 = sbr.rel (%p552) target = $region56
        $region55: #{tpu_custom_call.1} parent=51 // pred_region
          %s555 = sand.u32 %s115, 1
          %s556 = scalar_lea.sflag [#allocation4], %s555
          %s557 = sand.u32 %s115, 1
          %s558 = smul.addr %s557, 32
          %s559 = scalar_lea.vmem [#allocation8], %s558
          %560 = dma.done %s556, 512
        $region56: #{tpu_custom_call.1} parent=51 // pred_fallthru
          _
      $region52: #{tpu_custom_call.1} parent=5 // pred_fallthru
        _
    $region6: #{tpu_custom_call.1} parent=1 // loop_footer
      %s18 = sadd.s32 1, %s14
    $region7: #{tpu_custom_call.1} parent=1 // loop_footer_branch
      %13 = sbr.rel target = $region3
    $region8: #{tpu_custom_call.1} parent=1 // loop_exit
      _
    %561 = vsyncpa [#allocation3], 1
    %s562 = scalar_lea.sflag [#allocation3], 1
    %563 = vsyncpa %s562, 1
    %564 = vsyncpa [#allocation6], 1
    %565 = vsyncpa [#allocation4], 1
    %s566 = scalar_lea.sflag [#allocation4], 1
    %567 = vsyncpa %s566, 1

</llo_original>
